<compile_context>
chip_gen: v6e
topology: v6e:2x2x1
jax: 0.10.0
libtpu: 0.0.40
codegen_flags: <defaults>
</compile_context>

<pallas_src>
import functools

import numpy as np
import jax
import jax.numpy as jnp
from jax.experimental import pallas as pl
from jax.experimental.pallas import tpu as pltpu

LANE = 128

# Row indices of the packed (6, W) parameter slab.
ROW_WI, ROW_BI, ROW_BH, ROW_THEAD, ROW_WOH, ROW_BOUT = range(6)


def _round_up(x, m):
    return (x + m - 1) // m * m


def decoder_gru_kernel(xt_ref, h0_ref, whh_ref, rows_ref, out_ref, hlast_ref,
                       *, hidden_size, gate_stride, emb_lanes):
    """One GRU decode step per grid index; hidden state carried in hlast_ref."""
    H, Hp, NEp = hidden_size, gate_stride, emb_lanes
    step = pl.program_id(0)

    # Packed per-step inputs: lane 0 = speed, lane 1 = float(time index).
    xt = xt_ref[0]                                    # (B, 2) f32
    x = xt[:, 0:1]                                    # (B, 1) f32
    t = xt[:, 1:2].astype(jnp.int32)                  # (B, 1) i32 (exact, < 2^24)

    # Hidden-state carry lives in the resident hidden-output block.
    @pl.when(step == 0)
    def _():
        hlast_ref[...] = h0_ref[...]

    h = hlast_ref[...]                                # (B, H)
    B = h.shape[0]

    # ---- GRU cell, PyTorch gate order (r, z, n); gate g at lanes [g*Hp:]. ----
    w_i = rows_ref[ROW_WI:ROW_WI + 1, :]              # (1, W)  [w_ir | w_iz | w_in]
    b_i = rows_ref[ROW_BI:ROW_BI + 1, :]              # (1, W)  [b_ir+b_hr | b_iz+b_hz | b_in]
    b_h = rows_ref[ROW_BH:ROW_BH + 1, :]              # (1, W)  [0 | 0 | b_hn]

    gi = x * w_i + b_i                                # K=1 input path: pure VPU broadcast
    gh = jnp.dot(h, whh_ref[...],
                 preferred_element_type=jnp.float32) + b_h   # one fused MXU matmul

    r = jax.nn.sigmoid(gi[:, 0:H] + gh[:, 0:H])
    z = jax.nn.sigmoid(gi[:, Hp:Hp + H] + gh[:, Hp:Hp + H])
    n = jnp.tanh(gi[:, 2 * Hp:2 * Hp + H] + r * gh[:, 2 * Hp:2 * Hp + H])
    h_new = n + z * (h - n)                           # == (1-z)*n + z*h
    hlast_ref[...] = h_new                            # carry forward / final hidden

    # ---- out = sigmoid(Linear(cat([emb(t), h_new]))), collapsed head (O=1). ----
    # emb only feeds the head, so table @ w_out[:, :E] is pre-folded into one
    # 256-lane row: its contribution is a one-hot select + lane reduction.
    lane_ids = jax.lax.broadcasted_iota(jnp.int32, (B, NEp), 1)
    onehot = lane_ids == t                            # (B, NEp) bool
    t_head = rows_ref[ROW_THEAD:ROW_THEAD + 1, 0:NEp]             # (1, NEp)
    emb_head = jnp.sum(jnp.where(onehot, t_head, 0.0),
                       axis=-1, keepdims=True)        # (B, 1)
    w_oh = rows_ref[ROW_WOH:ROW_WOH + 1, 0:H]         # (1, H)
    b_o = rows_ref[ROW_BOUT:ROW_BOUT + 1, 0:1]        # (1, 1)
    logits = emb_head + jnp.sum(h_new * w_oh, axis=-1, keepdims=True) + b_o
    out_ref[step] = jax.nn.sigmoid(logits)            # row of the resident (T,B,O) block


class DecoderGRUPallas:
    """Pallas/JAX re-implementation of the PyTorch DecoderGRU forward pass."""

    def __init__(self, key, hidden_size=32, embedding_size=16, output_size=1,
                 num_embeddings=196):
        assert output_size == 1, "head is collapsed to lane reductions (O must be 1)"
        # TODO(synk): for output_size > 1 keep a folded (256, O) head operand and use
        # an MXU matmul for the emb contribution instead of the lane reduce.
        self.hidden_size = H = hidden_size
        self.embedding_size = E = embedding_size
        self.output_size = O = output_size
        self.num_embeddings = NE = num_embeddings

        ks = jax.random.split(key, 7)
        s = 1.0 / np.sqrt(H)

        # ---- original PyTorch-layout parameters (used by the reference path) ----
        self.embedding = jax.random.normal(ks[0], (NE, E), jnp.float32)          # nn.Embedding
        self.w_ih = jax.random.uniform(ks[1], (3 * H, 1), jnp.float32, -s, s)    # nn.GRU
        self.w_hh = jax.random.uniform(ks[2], (3 * H, H), jnp.float32, -s, s)
        self.b_ih = jax.random.uniform(ks[3], (3 * H,), jnp.float32, -s, s)
        self.b_hh = jax.random.uniform(ks[4], (3 * H,), jnp.float32, -s, s)
        so = 1.0 / np.sqrt(H + E)
        self.w_out = jax.random.uniform(ks[5], (O, E + H), jnp.float32, -so, so)  # nn.Linear
        self.b_out = jax.random.uniform(ks[6], (O,), jnp.float32, -so, so)

        # ---- packed, lane-aligned kernel operands ----
        self.gate_stride = Hp = _round_up(H, LANE)     # gate g at lanes [g*Hp, g*Hp+H)
        self.emb_lanes = NEp = _round_up(NE, LANE)     # one-hot width (196 -> 256)
        self.row_width = W = max(3 * Hp, NEp)

        # Fused hidden weight (H, W): columns [g*Hp : g*Hp+H] = W_h{r,z,n}^T.
        whh_pad = jnp.zeros((H, W), jnp.float32)
        for g in range(3):
            whh_pad = whh_pad.at[:, g * Hp:g * Hp + H].set(self.w_hh[g * H:(g + 1) * H].T)
        self.whh_pad = whh_pad

        def gate_row(vr, vz, vn):
            row = jnp.zeros((W,), jnp.float32)
            row = row.at[0:H].set(vr)
            row = row.at[Hp:Hp + H].set(vz)
            row = row.at[2 * Hp:2 * Hp + H].set(vn)
            return row

        zero_h = jnp.zeros((H,), jnp.float32)
        row_wi = gate_row(self.w_ih[:H, 0], self.w_ih[H:2 * H, 0], self.w_ih[2 * H:, 0])
        row_bi = gate_row(self.b_ih[:H] + self.b_hh[:H],
                          self.b_ih[H:2 * H] + self.b_hh[H:2 * H],
                          self.b_ih[2 * H:])
        row_bh = gate_row(zero_h, zero_h, self.b_hh[2 * H:])
        # Folded embedding head: table_head[i] = embedding[i] . w_out[0, :E]
        # (plain multiply+reduce in f32; padded rows stay zero -> zero contribution).
        table_pad = jnp.zeros((NEp, E), jnp.float32).at[:NE].set(self.embedding)
        table_head = jnp.sum(table_pad * self.w_out[0, :E][None, :], axis=1)      # (NEp,)
        row_thead = jnp.zeros((W,), jnp.float32).at[:NEp].set(table_head)
        row_woh = jnp.zeros((W,), jnp.float32).at[:H].set(self.w_out[0, E:])
        row_bout = jnp.zeros((W,), jnp.float32).at[0].set(self.b_out[0])
        self.rows = jnp.stack(
            [row_wi, row_bi, row_bh, row_thead, row_woh, row_bout])               # (6, W)

    # ---------------- Pallas forward ----------------
    def forward_rollout(self, speeds, times, hidden):
        """Run T decode steps in ONE pallas_call (weights VMEM-resident).
        speeds: (T, B) f32, times: (T, B) int, hidden: (1, B, H) f32.
        Returns (outputs (T, B, O), final hidden (1, B, H))."""
        T, B = speeds.shape
        H, O, W = self.hidden_size, self.output_size, self.row_width
        xt = jnp.stack([speeds.astype(jnp.float32),
                        times.astype(jnp.float32)], axis=-1)                      # (T, B, 2)
        h0 = hidden[0].astype(jnp.float32)                                        # (B, H)

        kernel = functools.partial(decoder_gru_kernel,
                                   hidden_size=H,
                                   gate_stride=self.gate_stride,
                                   emb_lanes=self.emb_lanes)
        n_rows = self.rows.shape[0]
        out, h_last = pl.pallas_call(
            kernel,
            out_shape=(jax.ShapeDtypeStruct((T, B, O), jnp.float32),
                       jax.ShapeDtypeStruct((B, H), jnp.float32)),
            grid=(T,),
            in_specs=[
                pl.BlockSpec((1, B, 2), lambda t: (t, 0, 0)),      # per-step x/t slab (pipelined)
                pl.BlockSpec((B, H), lambda t: (0, 0)),            # initial hidden (read at step 0)
                pl.BlockSpec((H, W), lambda t: (0, 0)),            # fused W_hh, VMEM-resident
                pl.BlockSpec((n_rows, W), lambda t: (0, 0)),       # packed 1-row params, resident
            ],
            out_specs=(
                pl.BlockSpec((T, B, O), lambda t: (0, 0, 0)),      # resident output slab
                pl.BlockSpec((B, H), lambda t: (0, 0)),            # hidden carry / final hidden
            ),
            compiler_params=pltpu.CompilerParams(
                dimension_semantics=("arbitrary",)),               # sequential carry over T
            # TODO(synk): if batch grows, add a parallel batch-tile grid axis so both
            # v7x TensorCores are used (T axis must stay "arbitrary").
        )(xt, h0, self.whh_pad, self.rows)
        return out, h_last.reshape(1, B, H)

    def forward(self, input_speed, time, hidden):
        """Single decode step, faithful to the PyTorch module's forward()."""
        out_seq, hidden_new = self.forward_rollout(
            input_speed.reshape(1, -1), time.reshape(1, -1), hidden)
        return out_seq[0], hidden_new

    # ---------------- pure-JAX reference (original param layout) ----------------
    def forward_ref(self, input_speed, time, hidden):
        B = input_speed.shape[0]
        x = input_speed.reshape(B, 1).astype(jnp.float32)
        h = hidden[0]
        emb = self.embedding[time]                                  # (B, E)
        gi = x @ self.w_ih.T + self.b_ih                            # (B, 3H)
        gh = h @ self.w_hh.T + self.b_hh                            # (B, 3H)
        i_r, i_z, i_n = jnp.split(gi, 3, axis=1)
        h_r, h_z, h_n = jnp.split(gh, 3, axis=1)
        r = jax.nn.sigmoid(i_r + h_r)
        z = jax.nn.sigmoid(i_z + h_z)
        n = jnp.tanh(i_n + r * h_n)
        h_new = (1.0 - z) * n + z * h
        out = jax.nn.sigmoid(
            jnp.concatenate([emb, h_new], axis=1) @ self.w_out.T + self.b_out)
        return out, h_new.reshape(1, B, self.hidden_size)

    def init_hidden(self, batch_size):
        return jnp.zeros((1, batch_size, self.hidden_size), jnp.float32)


if __name__ == "__main__":
    B, H, E, O, T = 8, 32, 16, 1, 8

    key = jax.random.PRNGKey(0)
    k_model, k_speed, k_time, k_sp2, k_tm2 = jax.random.split(key, 5)

    model = DecoderGRUPallas(k_model, hidden_size=H, embedding_size=E, output_size=O)

    # ---- single-step forward (the module's faithful forward()) ----
    speed = jax.random.uniform(k_speed, (B,), jnp.float32)
    tidx = jax.random.randint(k_time, (B,), 0, 196, jnp.int32)
    h0 = model.init_hidden(B)

    out1, h1 = model.forward(speed, tidx, h0)
    out2, h2 = model.forward(speed, tidx, h1)          # chained step: nonzero hidden path
    out2 = jax.block_until_ready(out2)
    h2 = jax.block_until_ready(h2)

    out1_ref, h1_ref = model.forward_ref(speed, tidx, h0)
    out2_ref, h2_ref = model.forward_ref(speed, tidx, h1_ref)

    np.testing.assert_allclose(np.asarray(out1), np.asarray(out1_ref), rtol=1e-4, atol=1e-5)
    np.testing.assert_allclose(np.asarray(h1), np.asarray(h1_ref), rtol=1e-4, atol=1e-5)
    np.testing.assert_allclose(np.asarray(out2), np.asarray(out2_ref), rtol=1e-4, atol=1e-5)
    np.testing.assert_allclose(np.asarray(h2), np.asarray(h2_ref), rtol=1e-4, atol=1e-5)

    # ---- fused T-step rollout: one pallas_call amortizes launch + weight DMA ----
    speeds = jax.random.uniform(k_sp2, (T, B), jnp.float32)
    tidxs = jax.random.randint(k_tm2, (T, B), 0, 196, jnp.int32)
    outs, hT = model.forward_rollout(speeds, tidxs, h0)
    outs = jax.block_until_ready(outs)
    hT = jax.block_until_ready(hT)

    h_ref = h0
    outs_ref = []
    for s in range(T):
        o_ref, h_ref = model.forward_ref(speeds[s], tidxs[s], h_ref)
        outs_ref.append(o_ref)
    outs_ref = jnp.stack(outs_ref)

    np.testing.assert_allclose(np.asarray(outs), np.asarray(outs_ref), rtol=2e-4, atol=5e-5)
    np.testing.assert_allclose(np.asarray(hT), np.asarray(h_ref), rtol=2e-4, atol=5e-5)

    assert out1.shape == (B, O) and h1.shape == (1, B, H) and outs.shape == (T, B, O)
    print("KERNEL_OK")
</pallas_src>

<mosaic_0001>
module attributes {stable_mosaic.version = 11 : i64} {
  func.func @decoder_gru_kernel(%arg0: i32, %arg1: memref<1x8x2xf32, #tpu.memory_space<vmem>>, %arg2: memref<8x32xf32, #tpu.memory_space<vmem>>, %arg3: memref<32x384xf32, #tpu.memory_space<vmem>>, %arg4: memref<6x384xf32, #tpu.memory_space<vmem>>, %arg5: memref<1x8x1xf32, #tpu.memory_space<vmem>>, %arg6: memref<8x32xf32, #tpu.memory_space<vmem>>) attributes {dimension_semantics = [#tpu.dimension_semantics<arbitrary>], iteration_bounds = array<i64: 1>, scalar_prefetch = 0 : i64, scratch_operands = 0 : i64, tpu.core_type = #tpu.core_type<tc>, window_params = [{transform_indices = @transform_0, window_bounds = array<i64: 1, 8, 2>}, {pipeline_mode = #tpu.pipeline_mode<synchronous>, transform_indices = @transform_1, window_bounds = array<i64: 8, 32>}, {pipeline_mode = #tpu.pipeline_mode<synchronous>, transform_indices = @transform_2, window_bounds = array<i64: 32, 384>}, {pipeline_mode = #tpu.pipeline_mode<synchronous>, transform_indices = @transform_3, window_bounds = array<i64: 6, 384>}, {pipeline_mode = #tpu.pipeline_mode<synchronous>, transform_indices = @transform_4, window_bounds = array<i64: 1, 8, 1>}, {pipeline_mode = #tpu.pipeline_mode<synchronous>, transform_indices = @transform_5, window_bounds = array<i64: 8, 32>}]} {
    %c0 = arith.constant 0 : index
    %c0_0 = arith.constant 0 : index
    %c0_1 = arith.constant 0 : index
    %0 = vector.load %arg1[%c0, %c0_0, %c0_1] : memref<1x8x2xf32, #tpu.memory_space<vmem>>, vector<1x8x2xf32>
    %1 = vector.shape_cast %0 : vector<1x8x2xf32> to vector<8x2xf32>
    %2 = vector.extract_strided_slice %1 {offsets = [0, 0], sizes = [8, 1], strides = [1, 1]} : vector<8x2xf32> to vector<8x1xf32>
    %3 = vector.extract_strided_slice %1 {offsets = [0, 1], sizes = [8, 1], strides = [1, 1]} : vector<8x2xf32> to vector<8x1xf32>
    %4 = arith.fptosi %3 : vector<8x1xf32> to vector<8x1xi32>
    %c0_i32 = arith.constant 0 : i32
    %5 = arith.cmpi eq, %arg0, %c0_i32 : i32
    %6 = arith.extui %5 : i1 to i32
    %c0_i32_2 = arith.constant 0 : i32
    %7 = arith.cmpi ne, %6, %c0_i32_2 : i32
    scf.if %7 {
      %c0_24 = arith.constant 0 : index
      %c0_25 = arith.constant 0 : index
      %74 = vector.load %arg2[%c0_24, %c0_25] : memref<8x32xf32, #tpu.memory_space<vmem>>, vector<8x32xf32>
      %c0_26 = arith.constant 0 : index
      %c0_27 = arith.constant 0 : index
      %75 = vector.load %arg6[%c0_26, %c0_27] : memref<8x32xf32, #tpu.memory_space<vmem>>, vector<8x32xf32>
      tpu.vector_store %arg6[%c0_26, %c0_27], %74 {strides = array<i32>} : memref<8x32xf32, #tpu.memory_space<vmem>>, vector<8x32xf32>,
    } else {
    }
    %c0_3 = arith.constant 0 : index
    %c0_4 = arith.constant 0 : index
    %8 = vector.load %arg6[%c0_3, %c0_4] : memref<8x32xf32, #tpu.memory_space<vmem>>, vector<8x32xf32>
    %c0_5 = arith.constant 0 : index
    %c0_6 = arith.constant 0 : index
    %9 = vector.load %arg4[%c0_5, %c0_6] : memref<6x384xf32, #tpu.memory_space<vmem>>, vector<1x384xf32>
    %c1 = arith.constant 1 : index
    %c0_7 = arith.constant 0 : index
    %10 = vector.load %arg4[%c1, %c0_7] : memref<6x384xf32, #tpu.memory_space<vmem>>, vector<1x384xf32>
    %c2 = arith.constant 2 : index
    %c0_8 = arith.constant 0 : index
    %11 = vector.load %arg4[%c2, %c0_8] : memref<6x384xf32, #tpu.memory_space<vmem>>, vector<1x384xf32>
    %12 = vector.broadcast %2 : vector<8x1xf32> to vector<8x384xf32>
    %13 = vector.broadcast %9 : vector<1x384xf32> to vector<8x384xf32>
    %14 = arith.mulf %12, %13 : vector<8x384xf32>
    %15 = vector.broadcast %10 : vector<1x384xf32> to vector<8x384xf32>
    %16 = arith.addf %14, %15 : vector<8x384xf32>
    %c0_9 = arith.constant 0 : index
    %c0_10 = arith.constant 0 : index
    %17 = vector.load %arg3[%c0_9, %c0_10] : memref<32x384xf32, #tpu.memory_space<vmem>>, vector<32x384xf32>
    %cst = arith.constant dense<0.000000e+00> : vector<8x384xf32>
    %18 = tpu.matmul %8, %17, %cst {dimension_numbers = #tpu.dot_dimension_numbers<[1], [0], [0], [1], [0, 0, 1, 1], [], []>} : vector<8x32xf32>, vector<32x384xf32>, vector<8x384xf32> -> vector<8x384xf32>
    %19 = vector.broadcast %11 : vector<1x384xf32> to vector<8x384xf32>
    %20 = arith.addf %18, %19 : vector<8x384xf32>
    %21 = vector.extract_strided_slice %16 {offsets = [0, 0], sizes = [8, 32], strides = [1, 1]} : vector<8x384xf32> to vector<8x32xf32>
    %22 = vector.extract_strided_slice %20 {offsets = [0, 0], sizes = [8, 32], strides = [1, 1]} : vector<8x384xf32> to vector<8x32xf32>
    %23 = arith.addf %21, %22 : vector<8x32xf32>
    %24 = arith.negf %23 : vector<8x32xf32>
    %25 = math.exp %24 : vector<8x32xf32>
    %cst_11 = arith.constant 1.000000e+00 : f32
    %26 = vector.broadcast %cst_11 : f32 to vector<8x32xf32>
    %27 = arith.addf %26, %25 : vector<8x32xf32>
    %28 = arith.divf %26, %27 : vector<8x32xf32>
    %29 = vector.extract_strided_slice %16 {offsets = [0, 128], sizes = [8, 32], strides = [1, 1]} : vector<8x384xf32> to vector<8x32xf32>
    %30 = vector.extract_strided_slice %20 {offsets = [0, 128], sizes = [8, 32], strides = [1, 1]} : vector<8x384xf32> to vector<8x32xf32>
    %31 = arith.addf %29, %30 : vector<8x32xf32>
    %32 = arith.negf %31 : vector<8x32xf32>
    %33 = math.exp %32 : vector<8x32xf32>
    %cst_12 = arith.constant 1.000000e+00 : f32
    %34 = vector.broadcast %cst_12 : f32 to vector<8x32xf32>
    %35 = arith.addf %34, %33 : vector<8x32xf32>
    %36 = arith.divf %34, %35 : vector<8x32xf32>
    %37 = vector.extract_strided_slice %16 {offsets = [0, 256], sizes = [8, 32], strides = [1, 1]} : vector<8x384xf32> to vector<8x32xf32>
    %38 = vector.extract_strided_slice %20 {offsets = [0, 256], sizes = [8, 32], strides = [1, 1]} : vector<8x384xf32> to vector<8x32xf32>
    %39 = arith.mulf %28, %38 : vector<8x32xf32>
    %40 = arith.addf %37, %39 : vector<8x32xf32>
    %41 = math.tanh %40 : vector<8x32xf32>
    %42 = arith.subf %8, %41 : vector<8x32xf32>
    %43 = arith.mulf %36, %42 : vector<8x32xf32>
    %44 = arith.addf %41, %43 : vector<8x32xf32>
    %c0_13 = arith.constant 0 : index
    %c0_14 = arith.constant 0 : index
    %45 = vector.load %arg6[%c0_13, %c0_14] : memref<8x32xf32, #tpu.memory_space<vmem>>, vector<8x32xf32>
    tpu.vector_store %arg6[%c0_13, %c0_14], %44 {strides = array<i32>} : memref<8x32xf32, #tpu.memory_space<vmem>>, vector<8x32xf32>,
    %46 = tpu.iota {dimensions = array<i32: 1>} : vector<8x256xi32>
    %47 = vector.broadcast %4 : vector<8x1xi32> to vector<8x256xi32>
    %48 = arith.cmpi eq, %46, %47 : vector<8x256xi32>
    %c3 = arith.constant 3 : index
    %c0_15 = arith.constant 0 : index
    %49 = vector.load %arg4[%c3, %c0_15] : memref<6x384xf32, #tpu.memory_space<vmem>>, vector<1x256xf32>
    %cst_16 = arith.constant 0.000000e+00 : f32
    %50 = vector.shape_cast %49 : vector<1x256xf32> to vector<1x256xf32>
    %51 = vector.broadcast %50 : vector<1x256xf32> to vector<8x256xf32>
    %52 = vector.broadcast %cst_16 : f32 to vector<8x256xf32>
    %53 = arith.select %48, %51, %52 : vector<8x256xi1>, vector<8x256xf32>
    %cst_17 = arith.constant dense<0.000000e+00> : vector<8xf32>
    %54 = vector.multi_reduction <add>, %53, %cst_17 [1] : vector<8x256xf32> to vector<8xf32>
    %55 = vector.shape_cast %54 : vector<8xf32> to vector<8x1xf32>
    %c4 = arith.constant 4 : index
    %c0_18 = arith.constant 0 : index
    %56 = vector.load %arg4[%c4, %c0_18] : memref<6x384xf32, #tpu.memory_space<vmem>>, vector<1x32xf32>
    %c5 = arith.constant 5 : index
    %c0_19 = arith.constant 0 : index
    %57 = vector.load %arg4[%c5, %c0_19] : memref<6x384xf32, #tpu.memory_space<vmem>>, vector<1x1xf32>
    %58 = vector.broadcast %56 : vector<1x32xf32> to vector<8x32xf32>
    %59 = arith.mulf %44, %58 : vector<8x32xf32>
    %cst_20 = arith.constant dense<0.000000e+00> : vector<8xf32>
    %60 = vector.multi_reduction <add>, %59, %cst_20 [1] : vector<8x32xf32> to vector<8xf32>
    %61 = vector.shape_cast %60 : vector<8xf32> to vector<8x1xf32>
    %62 = arith.addf %55, %61 : vector<8x1xf32>
    %63 = vector.broadcast %57 : vector<1x1xf32> to vector<8x1xf32>
    %64 = arith.addf %62, %63 : vector<8x1xf32>
    %65 = arith.negf %64 : vector<8x1xf32>
    %66 = math.exp %65 : vector<8x1xf32>
    %cst_21 = arith.constant 1.000000e+00 : f32
    %67 = vector.broadcast %cst_21 : f32 to vector<8x1xf32>
    %68 = arith.addf %67, %66 : vector<8x1xf32>
    %69 = arith.divf %67, %68 : vector<8x1xf32>
    %70 = arith.index_cast %arg0 : i32 to index
    %c0_22 = arith.constant 0 : index
    %c0_23 = arith.constant 0 : index
    %71 = vector.load %arg5[%70, %c0_22, %c0_23] : memref<1x8x1xf32, #tpu.memory_space<vmem>>, vector<1x8x1xf32>
    %72 = vector.shape_cast %71 : vector<1x8x1xf32> to vector<8x1xf32>
    %73 = vector.shape_cast %69 : vector<8x1xf32> to vector<1x8x1xf32>
    tpu.vector_store %arg5[%70, %c0_22, %c0_23], %73 {strides = array<i32>} : memref<1x8x1xf32, #tpu.memory_space<vmem>>, vector<1x8x1xf32>,
    return
  }
  func.func @transform_0(%arg0: i32) -> (i32, i32, i32) {
    %c0_i32 = arith.constant 0 : i32
    %c0_i32_0 = arith.constant 0 : i32
    %c0_i32_1 = arith.constant 0 : i32
    return %arg0, %c0_i32, %c0_i32_0 : i32, i32, i32
  }
  func.func @transform_1(%arg0: i32) -> (i32, i32) {
    %c0_i32 = arith.constant 0 : i32
    %c0_i32_0 = arith.constant 0 : i32
    %c0_i32_1 = arith.constant 0 : i32
    return %c0_i32, %c0_i32_0 : i32, i32
  }
  func.func @transform_2(%arg0: i32) -> (i32, i32) {
    %c0_i32 = arith.constant 0 : i32
    %c0_i32_0 = arith.constant 0 : i32
    %c0_i32_1 = arith.constant 0 : i32
    return %c0_i32, %c0_i32_0 : i32, i32
  }
  func.func @transform_3(%arg0: i32) -> (i32, i32) {
    %c0_i32 = arith.constant 0 : i32
    %c0_i32_0 = arith.constant 0 : i32
    %c0_i32_1 = arith.constant 0 : i32
    return %c0_i32, %c0_i32_0 : i32, i32
  }
  func.func @transform_4(%arg0: i32) -> (i32, i32, i32) {
    %c0_i32 = arith.constant 0 : i32
    %c0_i32_0 = arith.constant 0 : i32
    %c0_i32_1 = arith.constant 0 : i32
    %c0_i32_2 = arith.constant 0 : i32
    return %c0_i32, %c0_i32_0, %c0_i32_1 : i32, i32, i32
  }
  func.func @transform_5(%arg0: i32) -> (i32, i32) {
    %c0_i32 = arith.constant 0 : i32
    %c0_i32_0 = arith.constant 0 : i32
    %c0_i32_1 = arith.constant 0 : i32
    return %c0_i32, %c0_i32_0 : i32, i32
  }
}

</mosaic_0001>

<llo_original>
// kernel: tpu_custom_call.1
$region0: #{tpu_custom_call.1}
  #allocation0 [shape = 'u32[]', space=smem, size = 0x4, offset = 0x4, fixed_abs, tag = 'smem constant byte address 0x4 - core index']
  #allocation1 [shape = 'u32[144,128]{1,0:T(1,128)}', space=vmem, size = 0x12000, scoped, tag = 'internal scratch']
  %s0 = inlined_call_operand.vmem [shape: f32[1,8,2], index: 0, kind: input, shape index: {}]
  %s1 = inlined_call_operand.vmem [shape: f32[8,32], index: 1, kind: input, shape index: {}]
  %s2 = inlined_call_operand.hbm [shape: f32[32,384], index: 2, kind: input, shape index: {}]
  %s3 = inlined_call_operand.hbm [shape: f32[6,384], index: 3, kind: input, shape index: {}]
  %s4 = inlined_call_operand.vmem [shape: f32[1,8,1], index: 4, kind: output, shape index: {0}]
  %s5 = inlined_call_operand.hbm [shape: f32[8,32], index: 5, kind: output, shape index: {1}]
  %6 = xla_tuple %s4, %s5
  %s7 = sld [smem:[#allocation0]]
  $region46: #{tpu_custom_call.1} parent=0
    _
  %s9 = ssub.s32 1, %s7
  %s10 = scalar_select 0, %s9, %s7
  $region1: #{tpu_custom_call.1} parent=0
    #allocation2 [shape = 'u8[49152]{0}', space=vmem, size = 0xc000, scoped, tag = 'input window, operand 2, single buffered']
    #allocation3 [shape = 's32[1]{0}', space=sflag, size = 0x4, scoped, tag = 'scoped memory for tpu_custom_call.1']
    #allocation4 [shape = 's32[1]{0}', space=sflag, size = 0x4, scoped, tag = 'scoped memory for tpu_custom_call.1']
    #allocation5 [shape = 'u8[12288]{0}', space=vmem, size = 0x3000, scoped, tag = 'input window, operand 3, single buffered']
    #allocation6 [shape = 's32[1]{0}', space=sflag, size = 0x4, scoped, tag = 'scoped memory for tpu_custom_call.1']
    #allocation7 [shape = 'u8[4096]{0}', space=vmem, size = 0x1000, scoped, tag = 'output window, operand 1, single buffered']
    %11 = vsyncpa [#allocation3], 0
    %12 = vsyncpa [#allocation6], 0
    %13 = vsyncpa [#allocation4], 0
    // Predicated region
    $region2: #{tpu_custom_call.1} parent=1 // pred_check
      _
    $region3: #{tpu_custom_call.1} parent=1 // pred_check_branch
      %15 = sbr.rel (0) target = $region5
    $region4: #{tpu_custom_call.1} parent=1 // pred_region
      _
    $region5: #{tpu_custom_call.1} parent=1 // pred_fallthru
      _
    // Predicated region
    $region6: #{tpu_custom_call.1} parent=1 // pred_check
      _
    $region7: #{tpu_custom_call.1} parent=1 // pred_check_branch
      %17 = sbr.rel (0) target = $region9
    $region8: #{tpu_custom_call.1} parent=1 // pred_region
      _
    $region9: #{tpu_custom_call.1} parent=1 // pred_fallthru
      _
    // Predicated region
    $region10: #{tpu_custom_call.1} parent=1 // pred_check
      _
    $region11: #{tpu_custom_call.1} parent=1 // pred_check_branch
      %19 = sbr.rel (0) target = $region13
    $region12: #{tpu_custom_call.1} parent=1 // pred_region
      %s21 = ssub.s32 1536, 1536
      %22 = vsyncadd [#allocation3], %s21
      %s23 = sshll.u32 [#allocation2], 4
      %s24 = int_to_ptr.vmem [resolvable:$true] %s23
      %29 = dma.hbm_to_vmem [thread:$0]  %s2, 1536, %s24, [#allocation3], 384, 384, 24
    $region13: #{tpu_custom_call.1} parent=1 // pred_fallthru
      _
    // Predicated region
    $region14: #{tpu_custom_call.1} parent=1 // pred_check
      _
    $region15: #{tpu_custom_call.1} parent=1 // pred_check_branch
      %31 = sbr.rel (0) target = $region17
    $region16: #{tpu_custom_call.1} parent=1 // pred_region
      %s33 = ssub.s32 384, 384
      %34 = vsyncadd [#allocation6], %s33
      %s36 = sshll.u32 [#allocation5], 4
      %s37 = int_to_ptr.vmem [resolvable:$true] %s36
      %39 = dma.hbm_to_vmem [thread:$0]  %s3, 384, %s37, [#allocation6]
    $region17: #{tpu_custom_call.1} parent=1 // pred_fallthru
      _
    // Predicated region
    $region18: #{tpu_custom_call.1} parent=1 // pred_check
      _
    $region19: #{tpu_custom_call.1} parent=1 // pred_check_branch
      %41 = sbr.rel (0) target = $region21
    $region20: #{tpu_custom_call.1} parent=1 // pred_region
      %42 = dma.done [#allocation3], 1536
    $region21: #{tpu_custom_call.1} parent=1 // pred_fallthru
      _
    // Predicated region
    $region22: #{tpu_custom_call.1} parent=1 // pred_check
      _
    $region23: #{tpu_custom_call.1} parent=1 // pred_check_branch
      %44 = sbr.rel (0) target = $region25
    $region24: #{tpu_custom_call.1} parent=1 // pred_region
      %45 = dma.done [#allocation6], 384
    $region25: #{tpu_custom_call.1} parent=1 // pred_fallthru
      _
    %v46 = vld [vmem:[%s0] sm:$0xff]
    %v47 = vcvt.f32.s32.to.zero.pseudo %v46
    %p48 = scmp.eq.s32.totalorder 0, 0
    // Predicated region
    $region26: #{tpu_custom_call.1} parent=1 // pred_check
      %p49 = pneg %p48
    $region27: #{tpu_custom_call.1} parent=1 // pred_check_branch
      %51 = sbr.rel (%p49) target = $region29
    $region28: #{tpu_custom_call.1} parent=1 // pred_region
      %v52 = vld [vmem:[%s1] sm:$0xff]
      %vm53 = vcmask 261120
      %54 = vst.msk [vmem:[#allocation7] sm:$0xff] %vm53, %v52
    $region29: #{tpu_custom_call.1} parent=1 // pred_fallthru
      _
    %v55 = vld [vmem:[#allocation7] sm:$0xff]
    %v56 = vld [vmem:[#allocation5] ss:$8 sm:$0x7]
    %s57 = scalar_lea.vmem [#allocation5], 1
    %v58 = vld [vmem:[%s57] ss:$8 sm:$0x7]
    %s59 = scalar_lea.vmem [#allocation5], 2
    %v60 = vld [vmem:[%s59] ss:$8 sm:$0x7]
    %62 = vset.pattern.permute.xlu0 0
    %63 = vperm.xlu0 %62, %v46
    %v64 = vpop.permute.xlu0 %63
    %v67 = vlaneseq
    %v68 = vshrl.u32 %v67, 7
    %v69 = vsub.s32 0, %v68
    %v70 = vrot.slane %v56, %v69
    %v71 = vlaneseq
    %v72 = vshrl.u32 %v71, 7
    %v73 = vsub.s32 1, %v72
    %v74 = vrot.slane %v56, %v73
    %v75 = vlaneseq
    %v76 = vshrl.u32 %v75, 7
    %v77 = vsub.s32 2, %v76
    %v78 = vrot.slane %v56, %v77
    %v82 = vmul.f32 %v64, %v70
    %v83 = vmul.f32 %v64, %v74
    %v84 = vmul.f32 %v64, %v78
    %v86 = vlaneseq
    %v87 = vshrl.u32 %v86, 7
    %v88 = vsub.s32 0, %v87
    %v89 = vrot.slane %v58, %v88
    %v90 = vlaneseq
    %v91 = vshrl.u32 %v90, 7
    %v92 = vsub.s32 1, %v91
    %v93 = vrot.slane %v58, %v92
    %v94 = vlaneseq
    %v95 = vshrl.u32 %v94, 7
    %v96 = vsub.s32 2, %v95
    %v97 = vrot.slane %v58, %v96
    %v101 = vadd.f32 %v82, %v89
    %v102 = vadd.f32 %v83, %v93
    %v103 = vadd.f32 %v84, %v97
    %v104 = vld [vmem:[#allocation2] sm:$0xff]
    %v105 = vld [vmem:[#allocation2 + $0x8] sm:$0xff]
    %v106 = vld [vmem:[#allocation2 + $0x10] sm:$0xff]
    %v107 = vld [vmem:[#allocation2 + $0x18] sm:$0xff]
    %v108 = vld [vmem:[#allocation2 + $0x20] sm:$0xff]
    %v109 = vld [vmem:[#allocation2 + $0x28] sm:$0xff]
    %v110 = vld [vmem:[#allocation2 + $0x30] sm:$0xff]
    %v111 = vld [vmem:[#allocation2 + $0x38] sm:$0xff]
    %v112 = vld [vmem:[#allocation2 + $0x40] sm:$0xff]
    %v113 = vld [vmem:[#allocation2 + $0x48] sm:$0xff]
    %v114 = vld [vmem:[#allocation2 + $0x50] sm:$0xff]
    %v115 = vld [vmem:[#allocation2 + $0x58] sm:$0xff]
    %v117 = vlaneseq
    %v118 = vshrl.u32 %v117, 7
    %v119 = vsub.s32 0, %v118
    %v120 = vrot.slane %v60, %v119
    %v121 = vlaneseq
    %v122 = vshrl.u32 %v121, 7
    %v123 = vsub.s32 1, %v122
    %v124 = vrot.slane %v60, %v123
    %v125 = vlaneseq
    %v126 = vshrl.u32 %v125, 7
    %v127 = vsub.s32 2, %v126
    %v128 = vrot.slane %v60, %v127
    %vm132 = vcmask 261120
    %v134 = vsel %vm132, %v55, 0
    %136 = vmatprep.subr.mxu0 0.0
    %137 = vmatpush1.msra.mxu0 0.0
    %138 = vmatprep.subr.mxu0 0.0
    %139 = vmatpush1.msra.mxu0 0.0
    %140 = vmatprep.subr.mxu0 0.0
    %141 = vmatpush1.msra.mxu0 0.0
    %142 = vmatprep.subr.mxu0 0.0
    %143 = vmatpush1.msra.mxu0 0.0
    %144 = vmatprep.subr.mxu0 0.0
    %145 = vmatpush1.msra.mxu0 0.0
    %146 = vmatprep.subr.mxu0 0.0
    %147 = vmatpush1.msra.mxu0 0.0
    %148 = vmatprep.subr.mxu0 0.0
    %149 = vmatpush1.msra.mxu0 0.0
    %150 = vmatprep.subr.mxu0 0.0
    %151 = vmatpush1.msra.mxu0 0.0
    %152 = vmatprep.subr.mxu0 0.0
    %153 = vmatpush1.msra.mxu0 0.0
    %154 = vmatprep.subr.mxu0 0.0
    %155 = vmatpush1.msra.mxu0 0.0
    %156 = vmatprep.subr.mxu0 0.0
    %157 = vmatpush1.msra.mxu0 0.0
    %158 = vmatprep.subr.mxu0 0.0
    %159 = vmatpush1.msra.mxu0 0.0
    %160 = vmatprep.subr.mxu0 %v114
    %161 = vmatpush1.msra.mxu0 %v113
    %162 = vmatprep.subr.mxu0 %v111
    %163 = vmatpush1.msra.mxu0 %v110
    %164 = vmatprep.subr.mxu0 %v108
    %165 = vmatpush1.msra.mxu0 %v107
    %166 = vmatprep.subr.mxu0 %v105
    %167 = vmatpush1.msra.mxu0 %v104
    %168 = vmatprep.subr.mxu0 0.0
    %169 = vmatpush2.msra.mxu0 0.0
    %170 = vmatprep.subr.mxu0 0.0
    %171 = vmatpush2.msra.mxu0 0.0
    %172 = vmatprep.subr.mxu0 0.0
    %173 = vmatpush2.msra.mxu0 0.0
    %174 = vmatprep.subr.mxu0 0.0
    %175 = vmatpush2.msra.mxu0 0.0
    %176 = vmatprep.subr.mxu0 0.0
    %177 = vmatpush2.msra.mxu0 0.0
    %178 = vmatprep.subr.mxu0 0.0
    %179 = vmatpush2.msra.mxu0 0.0
    %180 = vmatprep.subr.mxu0 0.0
    %181 = vmatpush2.msra.mxu0 0.0
    %182 = vmatprep.subr.mxu0 0.0
    %183 = vmatpush2.msra.mxu0 0.0
    %184 = vmatprep.subr.mxu0 0.0
    %185 = vmatpush2.msra.mxu0 0.0
    %186 = vmatprep.subr.mxu0 0.0
    %187 = vmatpush2.msra.mxu0 0.0
    %188 = vmatprep.subr.mxu0 0.0
    %189 = vmatpush2.msra.mxu0 0.0
    %190 = vmatprep.subr.mxu0 0.0
    %191 = vmatpush2.msra.mxu0 0.0
    %192 = vmatprep.subr.mxu0 0.0
    %193 = vmatpush2.msra.mxu0 0.0
    %194 = vmatprep.subr.mxu0 0.0
    %195 = vmatpush2.msra.mxu0 0.0
    %196 = vmatprep.subr.mxu0 0.0
    %197 = vmatpush2.msra.mxu0 0.0
    %198 = vmatprep.subr.mxu0 0.0
    %199 = vmatpush2.msra.mxu0 0.0
    %200 = vmatprep.mubr.f32.mxu0 0.0
    %201 = vmatmul.mubr.f32.gmra.mxu0 %v134
    %v202 = vpop.f32.mrf.mxu0
    %v203 = vadd.f32 %v120, %v202
    %v204 = vpop.f32.mrf.mxu0
    %v205 = vadd.f32 %v124, %v204
    %206 = vdwg.mxu0
    %207 = vmatprep.subr.mxu0 0.0
    %208 = vmatpush1.msra.mxu0 0.0
    %209 = vmatprep.subr.mxu0 0.0
    %210 = vmatpush1.msra.mxu0 0.0
    %211 = vmatprep.subr.mxu0 0.0
    %212 = vmatpush1.msra.mxu0 0.0
    %213 = vmatprep.subr.mxu0 0.0
    %214 = vmatpush1.msra.mxu0 0.0
    %215 = vmatprep.subr.mxu0 0.0
    %216 = vmatpush1.msra.mxu0 0.0
    %217 = vmatprep.subr.mxu0 0.0
    %218 = vmatpush1.msra.mxu0 0.0
    %219 = vmatprep.subr.mxu0 0.0
    %220 = vmatpush1.msra.mxu0 0.0
    %221 = vmatprep.subr.mxu0 0.0
    %222 = vmatpush1.msra.mxu0 0.0
    %223 = vmatprep.subr.mxu0 0.0
    %224 = vmatpush1.msra.mxu0 0.0
    %225 = vmatprep.subr.mxu0 0.0
    %226 = vmatpush1.msra.mxu0 0.0
    %227 = vmatprep.subr.mxu0 0.0
    %228 = vmatpush1.msra.mxu0 0.0
    %229 = vmatprep.subr.mxu0 0.0
    %230 = vmatpush1.msra.mxu0 0.0
    %231 = vmatprep.subr.mxu0 0.0
    %232 = vmatpush1.msra.mxu0 %v115
    %233 = vmatprep.subr.mxu0 0.0
    %234 = vmatpush1.msra.mxu0 %v112
    %235 = vmatprep.subr.mxu0 0.0
    %236 = vmatpush1.msra.mxu0 %v109
    %237 = vmatprep.subr.mxu0 0.0
    %238 = vmatpush1.msra.mxu0 %v106
    %239 = vmatprep.subr.mxu0 0.0
    %240 = vmatpush2.msra.mxu0 0.0
    %241 = vmatprep.subr.mxu0 0.0
    %242 = vmatpush2.msra.mxu0 0.0
    %243 = vmatprep.subr.mxu0 0.0
    %244 = vmatpush2.msra.mxu0 0.0
    %245 = vmatprep.subr.mxu0 0.0
    %246 = vmatpush2.msra.mxu0 0.0
    %247 = vmatprep.subr.mxu0 0.0
    %248 = vmatpush2.msra.mxu0 0.0
    %249 = vmatprep.subr.mxu0 0.0
    %250 = vmatpush2.msra.mxu0 0.0
    %251 = vmatprep.subr.mxu0 0.0
    %252 = vmatpush2.msra.mxu0 0.0
    %253 = vmatprep.subr.mxu0 0.0
    %254 = vmatpush2.msra.mxu0 0.0
    %255 = vmatprep.subr.mxu0 0.0
    %256 = vmatpush2.msra.mxu0 0.0
    %257 = vmatprep.subr.mxu0 0.0
    %258 = vmatpush2.msra.mxu0 0.0
    %259 = vmatprep.subr.mxu0 0.0
    %260 = vmatpush2.msra.mxu0 0.0
    %261 = vmatprep.subr.mxu0 0.0
    %262 = vmatpush2.msra.mxu0 0.0
    %263 = vmatprep.subr.mxu0 0.0
    %264 = vmatpush2.msra.mxu0 0.0
    %265 = vmatprep.subr.mxu0 0.0
    %266 = vmatpush2.msra.mxu0 0.0
    %267 = vmatprep.subr.mxu0 0.0
    %268 = vmatpush2.msra.mxu0 0.0
    %269 = vmatprep.subr.mxu0 0.0
    %270 = vmatpush2.msra.mxu0 0.0
    %271 = vmatprep.mubr.f32.mxu0 0.0
    %272 = vmatmul.mubr.f32.gmra.mxu0 %v134
    %v273 = vpop.f32.mrf.mxu0
    %v274 = vadd.f32 %v128, %v273
    %v275 = vpop.f32.mrf.mxu0
    %276 = vdwg.mxu0
    %v277 = vadd.f32 %v101, %v203
    %v278 = vxor.u32 %v277, 2147483648
    %v279 = vmul.f32 %v278, 1.442695
    %v280 = vpow.pop %v279
    %v281 = vadd.f32 %v280, 1.0
    %v282 = vrcp.pop %v281
    %v283 = vmul.f32 1.0, %v282
    %v284 = vadd.f32 %v102, %v205
    %v285 = vxor.u32 %v284, 2147483648
    %v286 = vmul.f32 %v285, 1.442695
    %v287 = vpow.pop %v286
    %v288 = vadd.f32 %v287, 1.0
    %v289 = vrcp.pop %v288
    %v290 = vmul.f32 1.0, %v289
    %v291 = vmul.f32 %v283, %v274
    %v292 = vadd.f32 %v103, %v291
    %v293 = vtanh.pop %v292
    %v294 = vsub.f32 %v55, %v293
    %v295 = vmul.f32 %v290, %v294
    %v296 = vadd.f32 %v293, %v295
    %297 = vst.msk [vmem:[#allocation7] sm:$0xff] %vm132, %v296
    %v298 = vlaneseq
    %v299 = vand.u32 %v298, 127
    %v300 = vadd.s32 %v299, 128
    %301 = vset.pattern.permute.xlu0 1
    %302 = vperm.xlu0 %301, %v47
    %v303 = vpop.permute.xlu0 %302
    %vm304 = vcmp.eq.s32.totalorder %v299, %v303
    %vm305 = vcmp.eq.s32.totalorder %v300, %v303
    %s306 = scalar_lea.vmem [#allocation5], 3
    %v307 = vld [vmem:[%s306] ss:$8 sm:$0x3]
    %v309 = vlaneseq
    %v310 = vshrl.u32 %v309, 7
    %v311 = vsub.s32 0, %v310
    %v312 = vrot.slane %v307, %v311
    %v313 = vlaneseq
    %v314 = vshrl.u32 %v313, 7
    %v315 = vsub.s32 1, %v314
    %v316 = vrot.slane %v307, %v315
    %v319 = vsel %vm304, %v312, 0.0
    %v320 = vsel %vm305, %v316, 0.0
    %v321 = vadd.f32 %v319, %v320
    %322 = vadd.xlane.f32.xlu0 %v321
    %v323 = vpop.xlane.xlu0 %322
    %v324 = vld [vmem:[#allocation5 + $0x4] ss:$0 sm:$0xff]
    %v325 = vld [vmem:[#allocation5 + $0x5] ss:$0 sm:$0xff]
    %v326 = vmul.f32 %v296, %v324
    %v327 = vsel %vm132, %v326, 0.0
    %328 = vadd.xlane.f32.xlu0 %v327
    %v329 = vpop.xlane.xlu0 %328
    %v330 = vadd.f32 %v323, %v329
    %v331 = vadd.f32 %v330, %v325
    %v332 = vxor.u32 %v331, 2147483648
    %v333 = vmul.f32 %v332, 1.442695
    %v334 = vpow.pop %v333
    %v335 = vadd.f32 %v334, 1.0
    %v336 = vrcp.pop %v335
    %v337 = vmul.f32 1.0, %v336
    %s338 = smul.u32 0, 8
    %s339 = scalar_lea.vmem %s4, %s338
    %vm340 = vcmask 7168
    %341 = vst.msk [vmem:[%s339] sm:$0xff] %vm340, %v337
    // Predicated region
    $region30: #{tpu_custom_call.1} parent=1 // pred_check
      _
    $region31: #{tpu_custom_call.1} parent=1 // pred_check_branch
      %343 = sbr.rel (0) target = $region33
    $region32: #{tpu_custom_call.1} parent=1 // pred_region
      _
    $region33: #{tpu_custom_call.1} parent=1 // pred_fallthru
      _
    // Predicated region
    $region34: #{tpu_custom_call.1} parent=1 // pred_check
      _
    $region35: #{tpu_custom_call.1} parent=1 // pred_check_branch
      %345 = sbr.rel (0) target = $region37
    $region36: #{tpu_custom_call.1} parent=1 // pred_region
      %s347 = ssub.s32 128, 128
      %348 = vsyncadd [#allocation4], %s347
      %s350 = sshll.u32 [#allocation7], 4
      %s351 = int_to_ptr.vmem [resolvable:$true] %s350
      %353 = dma.vmem_to_hbm [thread:$0]  %s351, 128, %s5, [#allocation4]
    $region37: #{tpu_custom_call.1} parent=1 // pred_fallthru
      _
    // Predicated region
    $region38: #{tpu_custom_call.1} parent=1 // pred_check
      _
    $region39: #{tpu_custom_call.1} parent=1 // pred_check_branch
      %355 = sbr.rel (0) target = $region41
    $region40: #{tpu_custom_call.1} parent=1 // pred_region
      _
    $region41: #{tpu_custom_call.1} parent=1 // pred_fallthru
      _
    // Predicated region
    $region42: #{tpu_custom_call.1} parent=1 // pred_check
      _
    $region43: #{tpu_custom_call.1} parent=1 // pred_check_branch
      %357 = sbr.rel (0) target = $region45
    $region44: #{tpu_custom_call.1} parent=1 // pred_region
      %358 = dma.done [#allocation4], 128
    $region45: #{tpu_custom_call.1} parent=1 // pred_fallthru
      _
    %359 = vsyncpa [#allocation3], 1
    %360 = vsyncpa [#allocation6], 1
    %361 = vsyncpa [#allocation4], 1

</llo_original>
